<compile_context>
chip_gen: v5e
topology: v5e:2x2
jax: 0.10.0
libtpu: 0.0.40
codegen_flags: <defaults>
</compile_context>

<pallas_src>
import functools

import jax
import jax.numpy as jnp
from jax.experimental import pallas as pl
from jax.experimental.pallas import tpu as pltpu

LANE = 128   # lane-dense padded width for the 12-wide hidden dim
H1 = 12      # fc1 output width
H2 = 9       # fc2 output width


def actionnet_kernel(x_ref, w1_ref, b1_ref, w2_ref, b2_ref, o_ref):
    # relu -> fc1 -> relu -> fc2 on the current batch tile.
    x = jnp.maximum(x_ref[...], 0.0)                                   # F.relu(mental_states)
    h = jnp.dot(x, w1_ref[...], preferred_element_type=jnp.float32)    # fc1 matmul (MXU), f32 acc
    h = jnp.maximum(h + b1_ref[...], 0.0)                              # fc1 bias + F.relu (f32)
    o = jnp.dot(h, w2_ref[...], preferred_element_type=jnp.float32)    # fc2 matmul (MXU)
    o_ref[...] = (o + b2_ref[...]).astype(o_ref.dtype)                 # narrow (TB, 9) store


def _round_up(x, m):
    return ((x + m - 1) // m) * m


def _cdiv(a, b):
    return -(-a // b)


_VMEM_CAP_CACHE = []


def _vmem_capacity_bytes():
    if not _VMEM_CAP_CACHE:
        try:
            _VMEM_CAP_CACHE.append(int(pltpu.get_tpu_info().vmem_capacity_bytes))
        except Exception:
            _VMEM_CAP_CACHE.append(64 * 1024 * 1024)  # conservative v7x-sized fallback
    return _VMEM_CAP_CACHE[0]


def _vmem_budget_bytes():
    # 25% headroom below physical capacity, clamped to sane bounds.
    cap = _vmem_capacity_bytes()
    return int(min(max((3 * cap) // 4, 32 << 20), 128 << 20))


def _pick_batch_tile(B, S, tb, in_bytes, sub):
    """Batch-tile rows: sublane-aligned, VMEM-budgeted, >=2 grid steps when possible."""
    tb = max(sub, (tb // sub) * sub)
    budget = _vmem_budget_bytes()
    s_lanes = max(LANE, _round_up(S, LANE))
    # Double-buffered x tile + double-buffered (lane-padded) f32 output tile, per row.
    row_bytes = 2 * s_lanes * in_bytes + 2 * LANE * 4
    # Resident weights/biases (double-buffered by Pallas, layout-padded).
    weight_bytes = 2 * (_round_up(S, sub) * LANE * in_bytes + LANE * LANE * 4 + 2 * 8 * LANE * 4)
    tb_cap = max(sub, ((budget - weight_bytes) // row_bytes) // sub * sub)
    # Force >=2 grid steps when the batch allows it so v7x can use both TensorCores.
    n_tiles_min = 2 if B >= 2 * sub else 1
    tb_split = _round_up(_cdiv(B, n_tiles_min), sub)
    return max(sub, min(tb, tb_cap, tb_split))


@functools.partial(jax.jit, static_argnames=("tb", "use_bf16"))
def actionnet_forward(x, w1, b1, w2, b2, *, tb=32768, use_bf16=False):
    """x: [B, S]; w1: [S, 12]; b1: [1, 12]; w2: [12, 9]; b2: [1, 9] -> [B, 9] f32."""
    B, S = x.shape

    in_dtype = jnp.bfloat16 if use_bf16 else jnp.float32
    sub = 16 if use_bf16 else 8
    xi = x.astype(in_dtype)

    # Hidden dim padded to 128 lanes (inert: zero cols stay 0 through ReLU and
    # hit zero rows of w2p). fc2 weights/bias keep the true 9-wide output.
    w1p = jnp.zeros((S, LANE), in_dtype).at[:, :H1].set(w1.astype(in_dtype))
    b1p = jnp.zeros((1, LANE), jnp.float32).at[:, :H1].set(b1.astype(jnp.float32))
    w2p = jnp.zeros((LANE, H2), jnp.float32).at[:H1, :].set(w2.astype(jnp.float32))
    b2f = b2.astype(jnp.float32).reshape(1, H2)

    TB = _pick_batch_tile(B, S, tb, jnp.dtype(in_dtype).itemsize, sub)
    grid = (_cdiv(B, TB),)  # ragged last tile: OOB reads unused, OOB writes masked

    out = pl.pallas_call(
        actionnet_kernel,
        out_shape=jax.ShapeDtypeStruct((B, H2), jnp.float32),
        grid=grid,
        in_specs=[
            pl.BlockSpec((TB, S), lambda i: (i, 0)),      # x: batch-tiled, pipelined
            pl.BlockSpec((S, LANE), lambda i: (0, 0)),    # w1: resident
            pl.BlockSpec((1, LANE), lambda i: (0, 0)),    # b1: resident
            pl.BlockSpec((LANE, H2), lambda i: (0, 0)),   # w2: resident
            pl.BlockSpec((1, H2), lambda i: (0, 0)),      # b2: resident
        ],
        out_specs=pl.BlockSpec((TB, H2), lambda i: (i, 0)),
        compiler_params=pltpu.CompilerParams(
            dimension_semantics=("parallel",),            # shards batch tiles on v7x's 2 TCs
            vmem_limit_bytes=_vmem_budget_bytes(),
        ),
    )(xi, w1p, b1p, w2p, b2f)

    return out


def init_params(key, states_size):
    """Deterministic init mirroring nn.Linear default (uniform in +-1/sqrt(fan_in))."""
    k1, k2, k3, k4 = jax.random.split(key, 4)
    bound1 = 1.0 / jnp.sqrt(jnp.float32(states_size))
    bound2 = 1.0 / jnp.sqrt(jnp.float32(12))
    w1 = jax.random.uniform(k1, (states_size, 12), jnp.float32, -bound1, bound1)
    b1 = jax.random.uniform(k2, (1, 12), jnp.float32, -bound1, bound1)
    w2 = jax.random.uniform(k3, (12, 9), jnp.float32, -bound2, bound2)
    b2 = jax.random.uniform(k4, (1, 9), jnp.float32, -bound2, bound2)
    return w1, b1, w2, b2


def reference_forward(x, w1, b1, w2, b2):
    h = jnp.maximum(x, 0.0) @ w1 + b1
    return jnp.maximum(h, 0.0) @ w2 + b2


if __name__ == "__main__":
    key = jax.random.PRNGKey(0)
    k_x1, k_x2, k_x3, k_p = jax.random.split(key, 4)

    states_size = 32
    w1, b1, w2, b2 = init_params(k_p, states_size)

    # 1) Small batch, exact f32 path.
    x1 = jax.random.normal(k_x1, (8, states_size), jnp.float32)
    out1 = jax.block_until_ready(actionnet_forward(x1, w1, b1, w2, b2))
    ref1 = reference_forward(x1, w1, b1, w2, b2)
    assert out1.shape == (8, 9)
    assert jnp.allclose(out1, ref1, atol=1e-5, rtol=1e-5)

    # 2) Ragged batch (not a tile multiple) exercising the 2-step grid + masked tail store.
    x2 = jax.random.normal(k_x2, (100, states_size), jnp.float32)
    out2 = jax.block_until_ready(actionnet_forward(x2, w1, b1, w2, b2))
    ref2 = reference_forward(x2, w1, b1, w2, b2)
    assert out2.shape == (100, 9)
    assert jnp.allclose(out2, ref2, atol=1e-5, rtol=1e-5)

    # 3) bf16 fast path (f32 accumulation) — loose tolerance.
    x3 = jax.random.normal(k_x3, (32, states_size), jnp.float32)
    out3 = jax.block_until_ready(actionnet_forward(x3, w1, b1, w2, b2, use_bf16=True))
    ref3 = reference_forward(x3, w1, b1, w2, b2)
    assert out3.shape == (32, 9)
    assert jnp.allclose(out3, ref3, atol=5e-2, rtol=5e-2)

    print("KERNEL_OK")
</pallas_src>

<mosaic_0001>
module attributes {stable_mosaic.version = 11 : i64} {
  func.func @actionnet_kernel(%arg0: i32, %arg1: memref<8x32xf32, #tpu.memory_space<vmem>>, %arg2: memref<32x128xf32, #tpu.memory_space<vmem>>, %arg3: memref<1x128xf32, #tpu.memory_space<vmem>>, %arg4: memref<128x9xf32, #tpu.memory_space<vmem>>, %arg5: memref<1x9xf32, #tpu.memory_space<vmem>>, %arg6: memref<8x9xf32, #tpu.memory_space<vmem>>) attributes {dimension_semantics = [#tpu.dimension_semantics<parallel>], iteration_bounds = array<i64: 1>, scalar_prefetch = 0 : i64, scratch_operands = 0 : i64, tpu.core_type = #tpu.core_type<tc>, window_params = [{transform_indices = @transform_0, window_bounds = array<i64: 8, 32>}, {pipeline_mode = #tpu.pipeline_mode<synchronous>, transform_indices = @transform_1, window_bounds = array<i64: 32, 128>}, {pipeline_mode = #tpu.pipeline_mode<synchronous>, transform_indices = @transform_2, window_bounds = array<i64: 1, 128>}, {pipeline_mode = #tpu.pipeline_mode<synchronous>, transform_indices = @transform_3, window_bounds = array<i64: 128, 9>}, {pipeline_mode = #tpu.pipeline_mode<synchronous>, transform_indices = @transform_4, window_bounds = array<i64: 1, 9>}, {transform_indices = @transform_5, window_bounds = array<i64: 8, 9>}]} {
    %c0 = arith.constant 0 : index
    %c0_0 = arith.constant 0 : index
    %0 = vector.load %arg1[%c0, %c0_0] : memref<8x32xf32, #tpu.memory_space<vmem>>, vector<8x32xf32>
    %cst = arith.constant 0.000000e+00 : f32
    %1 = vector.broadcast %cst : f32 to vector<8x32xf32>
    %2 = arith.maximumf %0, %1 : vector<8x32xf32>
    %c0_1 = arith.constant 0 : index
    %c0_2 = arith.constant 0 : index
    %3 = vector.load %arg2[%c0_1, %c0_2] : memref<32x128xf32, #tpu.memory_space<vmem>>, vector<32x128xf32>
    %cst_3 = arith.constant dense<0.000000e+00> : vector<8x128xf32>
    %4 = tpu.matmul %2, %3, %cst_3 {dimension_numbers = #tpu.dot_dimension_numbers<[1], [0], [0], [1], [0, 0, 1, 1], [], []>} : vector<8x32xf32>, vector<32x128xf32>, vector<8x128xf32> -> vector<8x128xf32>
    %c0_4 = arith.constant 0 : index
    %c0_5 = arith.constant 0 : index
    %5 = vector.load %arg3[%c0_4, %c0_5] : memref<1x128xf32, #tpu.memory_space<vmem>>, vector<1x128xf32>
    %6 = vector.broadcast %5 : vector<1x128xf32> to vector<8x128xf32>
    %7 = arith.addf %4, %6 : vector<8x128xf32>
    %cst_6 = arith.constant 0.000000e+00 : f32
    %8 = vector.broadcast %cst_6 : f32 to vector<8x128xf32>
    %9 = arith.maximumf %7, %8 : vector<8x128xf32>
    %c0_7 = arith.constant 0 : index
    %c0_8 = arith.constant 0 : index
    %10 = vector.load %arg4[%c0_7, %c0_8] : memref<128x9xf32, #tpu.memory_space<vmem>>, vector<128x9xf32>
    %cst_9 = arith.constant dense<0.000000e+00> : vector<8x9xf32>
    %11 = tpu.matmul %9, %10, %cst_9 {dimension_numbers = #tpu.dot_dimension_numbers<[1], [0], [0], [1], [0, 0, 1, 1], [], []>} : vector<8x128xf32>, vector<128x9xf32>, vector<8x9xf32> -> vector<8x9xf32>
    %c0_10 = arith.constant 0 : index
    %c0_11 = arith.constant 0 : index
    %12 = vector.load %arg5[%c0_10, %c0_11] : memref<1x9xf32, #tpu.memory_space<vmem>>, vector<1x9xf32>
    %13 = vector.broadcast %12 : vector<1x9xf32> to vector<8x9xf32>
    %14 = arith.addf %11, %13 : vector<8x9xf32>
    %c0_12 = arith.constant 0 : index
    %c0_13 = arith.constant 0 : index
    %15 = vector.load %arg6[%c0_12, %c0_13] : memref<8x9xf32, #tpu.memory_space<vmem>>, vector<8x9xf32>
    tpu.vector_store %arg6[%c0_12, %c0_13], %14 {strides = array<i32>} : memref<8x9xf32, #tpu.memory_space<vmem>>, vector<8x9xf32>,
    return
  }
  func.func @transform_0(%arg0: i32) -> (i32, i32) {
    %c0_i32 = arith.constant 0 : i32
    %c0_i32_0 = arith.constant 0 : i32
    return %arg0, %c0_i32 : i32, i32
  }
  func.func @transform_1(%arg0: i32) -> (i32, i32) {
    %c0_i32 = arith.constant 0 : i32
    %c0_i32_0 = arith.constant 0 : i32
    %c0_i32_1 = arith.constant 0 : i32
    return %c0_i32, %c0_i32_0 : i32, i32
  }
  func.func @transform_2(%arg0: i32) -> (i32, i32) {
    %c0_i32 = arith.constant 0 : i32
    %c0_i32_0 = arith.constant 0 : i32
    %c0_i32_1 = arith.constant 0 : i32
    return %c0_i32, %c0_i32_0 : i32, i32
  }
  func.func @transform_3(%arg0: i32) -> (i32, i32) {
    %c0_i32 = arith.constant 0 : i32
    %c0_i32_0 = arith.constant 0 : i32
    %c0_i32_1 = arith.constant 0 : i32
    return %c0_i32, %c0_i32_0 : i32, i32
  }
  func.func @transform_4(%arg0: i32) -> (i32, i32) {
    %c0_i32 = arith.constant 0 : i32
    %c0_i32_0 = arith.constant 0 : i32
    %c0_i32_1 = arith.constant 0 : i32
    return %c0_i32, %c0_i32_0 : i32, i32
  }
  func.func @transform_5(%arg0: i32) -> (i32, i32) {
    %c0_i32 = arith.constant 0 : i32
    %c0_i32_0 = arith.constant 0 : i32
    return %arg0, %c0_i32 : i32, i32
  }
}

</mosaic_0001>

<llo_original>
// kernel: actionnet_forward.1
$region0: #{actionnet_forward.1}
  #allocation0 [shape = 'u32[]', space=smem, size = 0x4, offset = 0x4, fixed_abs, tag = 'smem constant byte address 0x4 - core index']
  #allocation1 [shape = 'u32[72,128]{1,0:T(1,128)}', space=vmem, size = 0x9000, scoped, tag = 'internal scratch']
  %s0 = inlined_call_operand.vmem [shape: f32[8,32], index: 0, kind: input, shape index: {}]
  %s1 = inlined_call_operand.vmem [shape: f32[32,128], index: 1, kind: input, shape index: {}]
  %s2 = inlined_call_operand.vmem [shape: f32[1,128], index: 2, kind: input, shape index: {}]
  %s3 = inlined_call_operand.vmem [shape: f32[128,9], index: 3, kind: input, shape index: {}]
  %s4 = inlined_call_operand.vmem [shape: f32[1,9], index: 4, kind: input, shape index: {}]
  %s5 = inlined_call_operand.hbm [shape: f32[8,9], index: 5, kind: output, shape index: {}]
  %s6 = sld [smem:[#allocation0]]
  $region30: #{actionnet_forward.1} parent=0
    _
  %s8 = ssub.s32 1, %s6
  %s9 = scalar_select 0, %s8, %s6
  $region1: #{actionnet_forward.1} parent=0
    #allocation2 [shape = 'u8[4096]{0}', space=vmem, size = 0x1000, scoped, tag = 'output window, operand 0, single buffered']
    #allocation3 [shape = 's32[1]{0}', space=sflag, size = 0x4, scoped, tag = 'scoped memory for actionnet_forward.1']
    %10 = vsyncpa [#allocation3], 0
    // Predicated region
    $region2: #{actionnet_forward.1} parent=1 // pred_check
      _
    $region3: #{actionnet_forward.1} parent=1 // pred_check_branch
      %12 = sbr.rel (0) target = $region5
    $region4: #{actionnet_forward.1} parent=1 // pred_region
      _
    $region5: #{actionnet_forward.1} parent=1 // pred_fallthru
      _
    // Predicated region
    $region6: #{actionnet_forward.1} parent=1 // pred_check
      _
    $region7: #{actionnet_forward.1} parent=1 // pred_check_branch
      %14 = sbr.rel (0) target = $region9
    $region8: #{actionnet_forward.1} parent=1 // pred_region
      _
    $region9: #{actionnet_forward.1} parent=1 // pred_fallthru
      _
    // Predicated region
    $region10: #{actionnet_forward.1} parent=1 // pred_check
      _
    $region11: #{actionnet_forward.1} parent=1 // pred_check_branch
      %16 = sbr.rel (0) target = $region13
    $region12: #{actionnet_forward.1} parent=1 // pred_region
      _
    $region13: #{actionnet_forward.1} parent=1 // pred_fallthru
      _
    // Predicated region
    $region14: #{actionnet_forward.1} parent=1 // pred_check
      _
    $region15: #{actionnet_forward.1} parent=1 // pred_check_branch
      %18 = sbr.rel (0) target = $region17
    $region16: #{actionnet_forward.1} parent=1 // pred_region
      _
    $region17: #{actionnet_forward.1} parent=1 // pred_fallthru
      _
    // Predicated region
    $region18: #{actionnet_forward.1} parent=1 // pred_check
      _
    $region19: #{actionnet_forward.1} parent=1 // pred_check_branch
      %20 = sbr.rel (0) target = $region21
    $region20: #{actionnet_forward.1} parent=1 // pred_region
      _
    $region21: #{actionnet_forward.1} parent=1 // pred_fallthru
      _
    %v21 = vld [vmem:[%s0] sm:$0xff]
    %v22 = vmax.f32 %v21, 0.0
    %v23 = vld [vmem:[%s1] sm:$0xff]
    %v24 = vld [vmem:[%s1 + $0x8] sm:$0xff]
    %v25 = vld [vmem:[%s1 + $0x10] sm:$0xff]
    %v26 = vld [vmem:[%s1 + $0x18] sm:$0xff]
    %v27 = vld [vmem:[%s2] sm:$0x1]
    %v29 = vperm.slane %v27, 0
    %vm31 = vcmask 261120
    %v33 = vsel %vm31, %v22, 0
    %35 = vmatpush.msra.mxu0 0.0
    %36 = vmatpush.msra.mxu0 0.0
    %37 = vmatpush.msra.mxu0 0.0
    %38 = vmatpush.msra.mxu0 0.0
    %39 = vmatpush.msra.mxu0 0.0
    %40 = vmatpush.msra.mxu0 0.0
    %41 = vmatpush.msra.mxu0 0.0
    %42 = vmatpush.msra.mxu0 0.0
    %43 = vmatpush.msra.mxu0 0.0
    %44 = vmatpush.msra.mxu0 0.0
    %45 = vmatpush.msra.mxu0 0.0
    %46 = vmatpush.msra.mxu0 0.0
    %47 = vmatpush.msra.mxu0 %v26
    %48 = vmatpush.msra.mxu0 %v25
    %49 = vmatpush.msra.mxu0 %v24
    %50 = vmatpush.msra.mxu0 %v23
    %51 = vmatmul.f32.gmra.mxu0 %v33
    %v52 = vpop.f32.mrf.mxu0
    %v53 = vadd.f32 %v29, %v52
    %54 = vdwg.mxu0
    %v55 = vmax.f32 %v53, 0.0
    %v56 = vld [vmem:[%s3] sm:$0xff]
    %v57 = vld [vmem:[%s3 + $0x8] sm:$0xff]
    %v58 = vld [vmem:[%s3 + $0x10] sm:$0xff]
    %v59 = vld [vmem:[%s3 + $0x18] sm:$0xff]
    %v60 = vld [vmem:[%s3 + $0x20] sm:$0xff]
    %v61 = vld [vmem:[%s3 + $0x28] sm:$0xff]
    %v62 = vld [vmem:[%s3 + $0x30] sm:$0xff]
    %v63 = vld [vmem:[%s3 + $0x38] sm:$0xff]
    %v64 = vld [vmem:[%s3 + $0x40] sm:$0xff]
    %v65 = vld [vmem:[%s3 + $0x48] sm:$0xff]
    %v66 = vld [vmem:[%s3 + $0x50] sm:$0xff]
    %v67 = vld [vmem:[%s3 + $0x58] sm:$0xff]
    %v68 = vld [vmem:[%s3 + $0x60] sm:$0xff]
    %v69 = vld [vmem:[%s3 + $0x68] sm:$0xff]
    %v70 = vld [vmem:[%s3 + $0x70] sm:$0xff]
    %v71 = vld [vmem:[%s3 + $0x78] sm:$0xff]
    %v72 = vld [vmem:[%s4] sm:$0x1]
    %v74 = vperm.slane %v72, 0
    %76 = vmatpush.msra.mxu0 %v71
    %77 = vmatpush.msra.mxu0 %v70
    %78 = vmatpush.msra.mxu0 %v69
    %79 = vmatpush.msra.mxu0 %v68
    %80 = vmatpush.msra.mxu0 %v67
    %81 = vmatpush.msra.mxu0 %v66
    %82 = vmatpush.msra.mxu0 %v65
    %83 = vmatpush.msra.mxu0 %v64
    %84 = vmatpush.msra.mxu0 %v63
    %85 = vmatpush.msra.mxu0 %v62
    %86 = vmatpush.msra.mxu0 %v61
    %87 = vmatpush.msra.mxu0 %v60
    %88 = vmatpush.msra.mxu0 %v59
    %89 = vmatpush.msra.mxu0 %v58
    %90 = vmatpush.msra.mxu0 %v57
    %91 = vmatpush.msra.mxu0 %v56
    %92 = vmatmul.f32.gmra.mxu0 %v55
    %v93 = vpop.f32.mrf.mxu0
    %v94 = vadd.f32 %v74, %v93
    %95 = vdwg.mxu0
    %vm96 = vcmask 72704
    %97 = vst.msk [vmem:[#allocation2] sm:$0xff] %vm96, %v94
    // Predicated region
    $region22: #{actionnet_forward.1} parent=1 // pred_check
      _
    $region23: #{actionnet_forward.1} parent=1 // pred_check_branch
      %99 = sbr.rel (0) target = $region25
    $region24: #{actionnet_forward.1} parent=1 // pred_region
      %101 = vsyncadd [#allocation3], 0
      %s103 = sshll.u32 [#allocation2], 4
      %s104 = int_to_ptr.vmem [resolvable:$true] %s103
      %s105 = sshll.u32 %s5, 4
      %s106 = int_to_ptr.hbm [resolvable:$true] %s105
      %108 = dma.vmem_to_hbm [thread:$0]  %s104, 128, %s106, [#allocation3]
    $region25: #{actionnet_forward.1} parent=1 // pred_fallthru
      _
    // Predicated region
    $region26: #{actionnet_forward.1} parent=1 // pred_check
      _
    $region27: #{actionnet_forward.1} parent=1 // pred_check_branch
      %110 = sbr.rel (0) target = $region29
    $region28: #{actionnet_forward.1} parent=1 // pred_region
      %112 = dma.done [#allocation3], 128
    $region29: #{actionnet_forward.1} parent=1 // pred_fallthru
      _
    %113 = vsyncpa [#allocation3], 1

</llo_original>
